<compile_context>
chip_gen: v5e
topology: v5e:2x2
jax: 0.10.0
libtpu: 0.0.40
codegen_flags: <defaults>
</compile_context>

<pallas_src>
import functools
import math

import jax
import jax.numpy as jnp
from jax.experimental import pallas as pl
from jax.experimental.pallas import tpu as pltpu


def _fused_mhsa_kernel(q_ref, k_ref, v_ref, w_ref, b_ref, o_ref, *,
                       num_heads, head_dim, matmul_dtype):
    """Single grid step: whole problem resident in VMEM.

    q/k/v refs : (B, S, E)  matmul_dtype
    w_ref      : (E, E)     matmul_dtype   fc_out weight pre-transposed -> (in, out)
    b_ref      : (1, E)     f32
    o_ref      : (B, S, E)  f32
    """
    B, S, E = o_ref.shape
    q = q_ref[...]
    k = k_ref[...]
    v = v_ref[...]
    w = w_ref[...]

    scale = 1.0 / math.sqrt(head_dim)
    # Accumulate fc_out over the flattened (B*S, E) slab; avoids concatenating
    # per-head outputs across lanes.
    y = jnp.zeros((B * S, E), jnp.float32)

    for h in range(num_heads):                       # H is tiny -> static unroll
        sl = slice(h * head_dim, (h + 1) * head_dim)
        qh = q[:, :, sl]                             # (B, S, Dh) bf16
        kh = k[:, :, sl]
        vh = v[:, :, sl]

        # Batched QK^T in bf16 with f32 accumulation; scale on the f32 scores.
        s = jnp.einsum('bqd,bkd->bqk', qh, kh,
                       preferred_element_type=jnp.float32) * scale   # (B, S, S)

        # Numerically stable softmax in f32 (exact divide).
        s = s - jnp.max(s, axis=-1, keepdims=True)
        p = jnp.exp(s)
        p = p / jnp.sum(p, axis=-1, keepdims=True)
        # TODO(synk): attn_dropout is identity here (inference / eval semantics).

        oh = jnp.einsum('bqk,bkd->bqd', p.astype(matmul_dtype), vh,
                        preferred_element_type=jnp.float32)          # (B, S, Dh)

        # fc_out folded in per head: y += (P_h V_h) @ W[h*Dh:(h+1)*Dh, :]
        oh_flat = oh.reshape(B * S, head_dim).astype(matmul_dtype)   # merge lead dims
        y = y + jnp.dot(oh_flat, w[sl, :],
                        preferred_element_type=jnp.float32)          # (B*S, E)

    o_ref[...] = (y + b_ref[...]).reshape(B, S, E).astype(o_ref.dtype)


def multi_head_self_attention(values, keys, query, params, num_heads,
                              matmul_dtype=jnp.bfloat16):
    B, S, E = query.shape
    assert E % num_heads == 0
    Dh = E // num_heads

    # One-time wrapper-side prep (cheap XLA ops, outside the kernel):
    #  * cast matmul operands to bf16 (MXU bf16 path, halves HBM traffic),
    #  * pre-transpose the torch Linear weight (out,in) -> (in,out) once so the
    #    kernel contracts along the natural last dim with no in-kernel .T.
    q = query.astype(matmul_dtype)
    k = keys.astype(matmul_dtype)
    v = values.astype(matmul_dtype)
    w_t = params["fc_out_w"].T.astype(matmul_dtype)          # (E_in, E_out)
    b = params["fc_out_b"].reshape(1, E).astype(jnp.float32)

    kernel = functools.partial(_fused_mhsa_kernel, num_heads=num_heads,
                               head_dim=Dh, matmul_dtype=matmul_dtype)

    full3 = pl.BlockSpec((B, S, E), lambda i: (0, 0, 0))
    return pl.pallas_call(
        kernel,
        out_shape=jax.ShapeDtypeStruct((B, S, E), jnp.float32),
        grid=(1,),                                   # single step: overhead-bound shapes
        in_specs=[full3, full3, full3,
                  pl.BlockSpec((E, E), lambda i: (0, 0)),
                  pl.BlockSpec((1, E), lambda i: (0, 0))],
        out_specs=full3,
        compiler_params=pltpu.CompilerParams(
            dimension_semantics=("arbitrary",),
            vmem_limit_bytes=32 * 1024 * 1024),
    )(q, k, v, w_t, b)


def _reference_matched(values, keys, query, params, num_heads,
                       matmul_dtype=jnp.bfloat16):
    """Pure-JAX reference mirroring the kernel's math exactly
    (bf16 matmul operands, f32 scores/softmax, per-head fc_out accumulation)."""
    B, S, E = query.shape
    Dh = E // num_heads
    scale = 1.0 / math.sqrt(Dh)
    q = query.astype(matmul_dtype)
    k = keys.astype(matmul_dtype)
    v = values.astype(matmul_dtype)
    w_t = params["fc_out_w"].T.astype(matmul_dtype)
    bias = params["fc_out_b"].astype(jnp.float32)
    y = jnp.zeros((B, S, E), jnp.float32)
    for h in range(num_heads):
        sl = slice(h * Dh, (h + 1) * Dh)
        s = jnp.einsum("bqd,bkd->bqk", q[:, :, sl], k[:, :, sl],
                       preferred_element_type=jnp.float32) * scale
        s = s - jnp.max(s, axis=-1, keepdims=True)
        p = jnp.exp(s)
        p = p / jnp.sum(p, axis=-1, keepdims=True)
        oh = jnp.einsum("bqk,bkd->bqd", p.astype(matmul_dtype), v[:, :, sl],
                        preferred_element_type=jnp.float32)
        y = y + jnp.einsum("bsd,de->bse", oh.astype(matmul_dtype), w_t[sl, :],
                           preferred_element_type=jnp.float32)
    return y + bias


def _reference_f32(values, keys, query, params, num_heads):
    """Pure-JAX f32 reference mirroring the PyTorch forward exactly."""
    B, S, E = query.shape
    Dh = E // num_heads
    sh = lambda x: x.reshape(B, S, num_heads, Dh).transpose(2, 0, 1, 3)
    q, k, v = sh(query), sh(keys), sh(values)
    score = jnp.einsum("hbqd,hbkd->hbqk", q, k) / math.sqrt(Dh)
    attn = jax.nn.softmax(score, axis=-1)
    o = jnp.einsum("hbqk,hbkd->hbqd", attn, v)
    o = o.transpose(1, 2, 0, 3).reshape(B, S, E)
    return o @ params["fc_out_w"].T + params["fc_out_b"]


if __name__ == "__main__":
    # Small shapes consistent with the module: batch=2, seq=8, emb=32, heads=4
    B, S, E, H = 2, 8, 32, 4
    key = jax.random.PRNGKey(0)
    kv, kk, kq, kw, kb, k_q, k_k, k_v = jax.random.split(key, 8)

    values = jax.random.normal(kv, (B, S, E), dtype=jnp.float32)
    keys_ = jax.random.normal(kk, (B, S, E), dtype=jnp.float32)
    query = jax.random.normal(kq, (B, S, E), dtype=jnp.float32)

    bound = 1.0 / math.sqrt(E)
    params = {
        # fc_out is the only Linear actually used by forward().
        "fc_out_w": jax.random.uniform(kw, (E, E), jnp.float32, -bound, bound),
        "fc_out_b": jax.random.uniform(kb, (E,), jnp.float32, -bound, bound),
        # query/key/value Linear params exist in __init__ but are unused by
        # forward(); created here only for shape fidelity.
        "q_w": jax.random.uniform(k_q, (E, E), jnp.float32, -bound, bound),
        "k_w": jax.random.uniform(k_k, (E, E), jnp.float32, -bound, bound),
        "v_w": jax.random.uniform(k_v, (E, E), jnp.float32, -bound, bound),
    }

    out = multi_head_self_attention(values, keys_, query, params, num_heads=H)
    out = jax.block_until_ready(out)
    assert out.shape == (B, S, E)

    # Tight check vs a reference that mirrors the kernel's bf16/f32 mix exactly.
    ref_bf16 = _reference_matched(values, keys_, query, params, num_heads=H)
    assert jnp.allclose(out, ref_bf16, atol=5e-3, rtol=5e-3), \
        "mismatch vs bf16-matched reference"

    # Sanity check vs the exact f32 PyTorch-semantics reference
    # (bf16 matmul operands introduce small drift).
    ref_f32 = _reference_f32(values, keys_, query, params, num_heads=H)
    assert jnp.allclose(out, ref_f32, atol=5e-2, rtol=5e-2), \
        "mismatch vs f32 reference"

    print("KERNEL_OK")
</pallas_src>

<mosaic_0001>
module attributes {stable_mosaic.version = 11 : i64} {
  func.func @_fused_mhsa_kernel(%arg0: i32, %arg1: memref<2x8x32xbf16, #tpu.memory_space<vmem>>, %arg2: memref<2x8x32xbf16, #tpu.memory_space<vmem>>, %arg3: memref<2x8x32xbf16, #tpu.memory_space<vmem>>, %arg4: memref<32x32xbf16, #tpu.memory_space<vmem>>, %arg5: memref<1x32xf32, #tpu.memory_space<vmem>>, %arg6: memref<2x8x32xf32, #tpu.memory_space<vmem>>) attributes {dimension_semantics = [#tpu.dimension_semantics<arbitrary>], iteration_bounds = array<i64: 1>, scalar_prefetch = 0 : i64, scratch_operands = 0 : i64, tpu.core_type = #tpu.core_type<tc>, window_params = [{pipeline_mode = #tpu.pipeline_mode<synchronous>, transform_indices = @transform_0, window_bounds = array<i64: 2, 8, 32>}, {pipeline_mode = #tpu.pipeline_mode<synchronous>, transform_indices = @transform_1, window_bounds = array<i64: 2, 8, 32>}, {pipeline_mode = #tpu.pipeline_mode<synchronous>, transform_indices = @transform_2, window_bounds = array<i64: 2, 8, 32>}, {pipeline_mode = #tpu.pipeline_mode<synchronous>, transform_indices = @transform_3, window_bounds = array<i64: 32, 32>}, {pipeline_mode = #tpu.pipeline_mode<synchronous>, transform_indices = @transform_4, window_bounds = array<i64: 1, 32>}, {pipeline_mode = #tpu.pipeline_mode<synchronous>, transform_indices = @transform_5, window_bounds = array<i64: 2, 8, 32>}]} {
    %c0 = arith.constant 0 : index
    %c0_0 = arith.constant 0 : index
    %c0_1 = arith.constant 0 : index
    %0 = vector.load %arg1[%c0, %c0_0, %c0_1] : memref<2x8x32xbf16, #tpu.memory_space<vmem>>, vector<2x8x32xbf16>
    %c0_2 = arith.constant 0 : index
    %c0_3 = arith.constant 0 : index
    %c0_4 = arith.constant 0 : index
    %1 = vector.load %arg2[%c0_2, %c0_3, %c0_4] : memref<2x8x32xbf16, #tpu.memory_space<vmem>>, vector<2x8x32xbf16>
    %c0_5 = arith.constant 0 : index
    %c0_6 = arith.constant 0 : index
    %c0_7 = arith.constant 0 : index
    %2 = vector.load %arg3[%c0_5, %c0_6, %c0_7] : memref<2x8x32xbf16, #tpu.memory_space<vmem>>, vector<2x8x32xbf16>
    %c0_8 = arith.constant 0 : index
    %c0_9 = arith.constant 0 : index
    %3 = vector.load %arg4[%c0_8, %c0_9] : memref<32x32xbf16, #tpu.memory_space<vmem>>, vector<32x32xbf16>
    %cst = arith.constant 0.000000e+00 : f32
    %4 = vector.broadcast %cst : f32 to vector<16x32xf32>
    %5 = vector.extract_strided_slice %0 {offsets = [0, 0, 0], sizes = [2, 8, 8], strides = [1, 1, 1]} : vector<2x8x32xbf16> to vector<2x8x8xbf16>
    %6 = vector.extract_strided_slice %1 {offsets = [0, 0, 0], sizes = [2, 8, 8], strides = [1, 1, 1]} : vector<2x8x32xbf16> to vector<2x8x8xbf16>
    %7 = vector.extract_strided_slice %2 {offsets = [0, 0, 0], sizes = [2, 8, 8], strides = [1, 1, 1]} : vector<2x8x32xbf16> to vector<2x8x8xbf16>
    "tpu.trace_start"() <{level = 10 : i32, message = "bqd,bkd->bqk"}> : () -> ()
    %cst_10 = arith.constant dense<0.000000e+00> : vector<2x8x8xf32>
    %8 = tpu.matmul %5, %6, %cst_10 {dimension_numbers = #tpu.dot_dimension_numbers<[2], [2], [1], [1], [0, 0, 0, 1, 1, 1], [0], [0]>} : vector<2x8x8xbf16>, vector<2x8x8xbf16>, vector<2x8x8xf32> -> vector<2x8x8xf32>
    "tpu.trace_stop"() : () -> ()
    %cst_11 = arith.constant 0.353553385 : f32
    %9 = vector.broadcast %cst_11 : f32 to vector<2x8x8xf32>
    %10 = arith.mulf %8, %9 : vector<2x8x8xf32>
    %cst_12 = arith.constant dense<0xFF800000> : vector<2x8xf32>
    %11 = vector.multi_reduction <maximumf>, %10, %cst_12 [2] : vector<2x8x8xf32> to vector<2x8xf32>
    %12 = vector.shape_cast %11 : vector<2x8xf32> to vector<2x8x1xf32>
    %13 = vector.broadcast %12 : vector<2x8x1xf32> to vector<2x8x8xf32>
    %14 = arith.subf %10, %13 : vector<2x8x8xf32>
    %15 = math.exp %14 : vector<2x8x8xf32>
    %cst_13 = arith.constant dense<0.000000e+00> : vector<2x8xf32>
    %16 = vector.multi_reduction <add>, %15, %cst_13 [2] : vector<2x8x8xf32> to vector<2x8xf32>
    %17 = vector.shape_cast %16 : vector<2x8xf32> to vector<2x8x1xf32>
    %18 = vector.broadcast %17 : vector<2x8x1xf32> to vector<2x8x8xf32>
    %19 = arith.divf %15, %18 : vector<2x8x8xf32>
    %20 = arith.truncf %19 : vector<2x8x8xf32> to vector<2x8x8xbf16>
    "tpu.trace_start"() <{level = 10 : i32, message = "bqk,bkd->bqd"}> : () -> ()
    %cst_14 = arith.constant dense<0.000000e+00> : vector<2x8x8xf32>
    %21 = tpu.matmul %20, %7, %cst_14 {dimension_numbers = #tpu.dot_dimension_numbers<[2], [1], [1], [2], [0, 0, 0, 1, 1, 2], [0], [0]>} : vector<2x8x8xbf16>, vector<2x8x8xbf16>, vector<2x8x8xf32> -> vector<2x8x8xf32>
    "tpu.trace_stop"() : () -> ()
    %22 = vector.shape_cast %21 : vector<2x8x8xf32> to vector<16x8xf32>
    %23 = arith.truncf %22 : vector<16x8xf32> to vector<16x8xbf16>
    %24 = vector.extract_strided_slice %3 {offsets = [0, 0], sizes = [8, 32], strides = [1, 1]} : vector<32x32xbf16> to vector<8x32xbf16>
    %cst_15 = arith.constant dense<0.000000e+00> : vector<16x32xf32>
    %25 = tpu.matmul %23, %24, %cst_15 {dimension_numbers = #tpu.dot_dimension_numbers<[1], [0], [0], [1], [0, 0, 1, 1], [], []>} : vector<16x8xbf16>, vector<8x32xbf16>, vector<16x32xf32> -> vector<16x32xf32>
    %26 = arith.addf %4, %25 : vector<16x32xf32>
    %27 = vector.extract_strided_slice %0 {offsets = [0, 0, 8], sizes = [2, 8, 8], strides = [1, 1, 1]} : vector<2x8x32xbf16> to vector<2x8x8xbf16>
    %28 = vector.extract_strided_slice %1 {offsets = [0, 0, 8], sizes = [2, 8, 8], strides = [1, 1, 1]} : vector<2x8x32xbf16> to vector<2x8x8xbf16>
    %29 = vector.extract_strided_slice %2 {offsets = [0, 0, 8], sizes = [2, 8, 8], strides = [1, 1, 1]} : vector<2x8x32xbf16> to vector<2x8x8xbf16>
    "tpu.trace_start"() <{level = 10 : i32, message = "bqd,bkd->bqk"}> : () -> ()
    %cst_16 = arith.constant dense<0.000000e+00> : vector<2x8x8xf32>
    %30 = tpu.matmul %27, %28, %cst_16 {dimension_numbers = #tpu.dot_dimension_numbers<[2], [2], [1], [1], [0, 0, 0, 1, 1, 1], [0], [0]>} : vector<2x8x8xbf16>, vector<2x8x8xbf16>, vector<2x8x8xf32> -> vector<2x8x8xf32>
    "tpu.trace_stop"() : () -> ()
    %cst_17 = arith.constant 0.353553385 : f32
    %31 = vector.broadcast %cst_17 : f32 to vector<2x8x8xf32>
    %32 = arith.mulf %30, %31 : vector<2x8x8xf32>
    %cst_18 = arith.constant dense<0xFF800000> : vector<2x8xf32>
    %33 = vector.multi_reduction <maximumf>, %32, %cst_18 [2] : vector<2x8x8xf32> to vector<2x8xf32>
    %34 = vector.shape_cast %33 : vector<2x8xf32> to vector<2x8x1xf32>
    %35 = vector.broadcast %34 : vector<2x8x1xf32> to vector<2x8x8xf32>
    %36 = arith.subf %32, %35 : vector<2x8x8xf32>
    %37 = math.exp %36 : vector<2x8x8xf32>
    %cst_19 = arith.constant dense<0.000000e+00> : vector<2x8xf32>
    %38 = vector.multi_reduction <add>, %37, %cst_19 [2] : vector<2x8x8xf32> to vector<2x8xf32>
    %39 = vector.shape_cast %38 : vector<2x8xf32> to vector<2x8x1xf32>
    %40 = vector.broadcast %39 : vector<2x8x1xf32> to vector<2x8x8xf32>
    %41 = arith.divf %37, %40 : vector<2x8x8xf32>
    %42 = arith.truncf %41 : vector<2x8x8xf32> to vector<2x8x8xbf16>
    "tpu.trace_start"() <{level = 10 : i32, message = "bqk,bkd->bqd"}> : () -> ()
    %cst_20 = arith.constant dense<0.000000e+00> : vector<2x8x8xf32>
    %43 = tpu.matmul %42, %29, %cst_20 {dimension_numbers = #tpu.dot_dimension_numbers<[2], [1], [1], [2], [0, 0, 0, 1, 1, 2], [0], [0]>} : vector<2x8x8xbf16>, vector<2x8x8xbf16>, vector<2x8x8xf32> -> vector<2x8x8xf32>
    "tpu.trace_stop"() : () -> ()
    %44 = vector.shape_cast %43 : vector<2x8x8xf32> to vector<16x8xf32>
    %45 = arith.truncf %44 : vector<16x8xf32> to vector<16x8xbf16>
    %46 = vector.extract_strided_slice %3 {offsets = [8, 0], sizes = [8, 32], strides = [1, 1]} : vector<32x32xbf16> to vector<8x32xbf16>
    %cst_21 = arith.constant dense<0.000000e+00> : vector<16x32xf32>
    %47 = tpu.matmul %45, %46, %cst_21 {dimension_numbers = #tpu.dot_dimension_numbers<[1], [0], [0], [1], [0, 0, 1, 1], [], []>} : vector<16x8xbf16>, vector<8x32xbf16>, vector<16x32xf32> -> vector<16x32xf32>
    %48 = arith.addf %26, %47 : vector<16x32xf32>
    %49 = vector.extract_strided_slice %0 {offsets = [0, 0, 16], sizes = [2, 8, 8], strides = [1, 1, 1]} : vector<2x8x32xbf16> to vector<2x8x8xbf16>
    %50 = vector.extract_strided_slice %1 {offsets = [0, 0, 16], sizes = [2, 8, 8], strides = [1, 1, 1]} : vector<2x8x32xbf16> to vector<2x8x8xbf16>
    %51 = vector.extract_strided_slice %2 {offsets = [0, 0, 16], sizes = [2, 8, 8], strides = [1, 1, 1]} : vector<2x8x32xbf16> to vector<2x8x8xbf16>
    "tpu.trace_start"() <{level = 10 : i32, message = "bqd,bkd->bqk"}> : () -> ()
    %cst_22 = arith.constant dense<0.000000e+00> : vector<2x8x8xf32>
    %52 = tpu.matmul %49, %50, %cst_22 {dimension_numbers = #tpu.dot_dimension_numbers<[2], [2], [1], [1], [0, 0, 0, 1, 1, 1], [0], [0]>} : vector<2x8x8xbf16>, vector<2x8x8xbf16>, vector<2x8x8xf32> -> vector<2x8x8xf32>
    "tpu.trace_stop"() : () -> ()
    %cst_23 = arith.constant 0.353553385 : f32
    %53 = vector.broadcast %cst_23 : f32 to vector<2x8x8xf32>
    %54 = arith.mulf %52, %53 : vector<2x8x8xf32>
    %cst_24 = arith.constant dense<0xFF800000> : vector<2x8xf32>
    %55 = vector.multi_reduction <maximumf>, %54, %cst_24 [2] : vector<2x8x8xf32> to vector<2x8xf32>
    %56 = vector.shape_cast %55 : vector<2x8xf32> to vector<2x8x1xf32>
    %57 = vector.broadcast %56 : vector<2x8x1xf32> to vector<2x8x8xf32>
    %58 = arith.subf %54, %57 : vector<2x8x8xf32>
    %59 = math.exp %58 : vector<2x8x8xf32>
    %cst_25 = arith.constant dense<0.000000e+00> : vector<2x8xf32>
    %60 = vector.multi_reduction <add>, %59, %cst_25 [2] : vector<2x8x8xf32> to vector<2x8xf32>
    %61 = vector.shape_cast %60 : vector<2x8xf32> to vector<2x8x1xf32>
    %62 = vector.broadcast %61 : vector<2x8x1xf32> to vector<2x8x8xf32>
    %63 = arith.divf %59, %62 : vector<2x8x8xf32>
    %64 = arith.truncf %63 : vector<2x8x8xf32> to vector<2x8x8xbf16>
    "tpu.trace_start"() <{level = 10 : i32, message = "bqk,bkd->bqd"}> : () -> ()
    %cst_26 = arith.constant dense<0.000000e+00> : vector<2x8x8xf32>
    %65 = tpu.matmul %64, %51, %cst_26 {dimension_numbers = #tpu.dot_dimension_numbers<[2], [1], [1], [2], [0, 0, 0, 1, 1, 2], [0], [0]>} : vector<2x8x8xbf16>, vector<2x8x8xbf16>, vector<2x8x8xf32> -> vector<2x8x8xf32>
    "tpu.trace_stop"() : () -> ()
    %66 = vector.shape_cast %65 : vector<2x8x8xf32> to vector<16x8xf32>
    %67 = arith.truncf %66 : vector<16x8xf32> to vector<16x8xbf16>
    %68 = vector.extract_strided_slice %3 {offsets = [16, 0], sizes = [8, 32], strides = [1, 1]} : vector<32x32xbf16> to vector<8x32xbf16>
    %cst_27 = arith.constant dense<0.000000e+00> : vector<16x32xf32>
    %69 = tpu.matmul %67, %68, %cst_27 {dimension_numbers = #tpu.dot_dimension_numbers<[1], [0], [0], [1], [0, 0, 1, 1], [], []>} : vector<16x8xbf16>, vector<8x32xbf16>, vector<16x32xf32> -> vector<16x32xf32>
    %70 = arith.addf %48, %69 : vector<16x32xf32>
    %71 = vector.extract_strided_slice %0 {offsets = [0, 0, 24], sizes = [2, 8, 8], strides = [1, 1, 1]} : vector<2x8x32xbf16> to vector<2x8x8xbf16>
    %72 = vector.extract_strided_slice %1 {offsets = [0, 0, 24], sizes = [2, 8, 8], strides = [1, 1, 1]} : vector<2x8x32xbf16> to vector<2x8x8xbf16>
    %73 = vector.extract_strided_slice %2 {offsets = [0, 0, 24], sizes = [2, 8, 8], strides = [1, 1, 1]} : vector<2x8x32xbf16> to vector<2x8x8xbf16>
    "tpu.trace_start"() <{level = 10 : i32, message = "bqd,bkd->bqk"}> : () -> ()
    %cst_28 = arith.constant dense<0.000000e+00> : vector<2x8x8xf32>
    %74 = tpu.matmul %71, %72, %cst_28 {dimension_numbers = #tpu.dot_dimension_numbers<[2], [2], [1], [1], [0, 0, 0, 1, 1, 1], [0], [0]>} : vector<2x8x8xbf16>, vector<2x8x8xbf16>, vector<2x8x8xf32> -> vector<2x8x8xf32>
    "tpu.trace_stop"() : () -> ()
    %cst_29 = arith.constant 0.353553385 : f32
    %75 = vector.broadcast %cst_29 : f32 to vector<2x8x8xf32>
    %76 = arith.mulf %74, %75 : vector<2x8x8xf32>
    %cst_30 = arith.constant dense<0xFF800000> : vector<2x8xf32>
    %77 = vector.multi_reduction <maximumf>, %76, %cst_30 [2] : vector<2x8x8xf32> to vector<2x8xf32>
    %78 = vector.shape_cast %77 : vector<2x8xf32> to vector<2x8x1xf32>
    %79 = vector.broadcast %78 : vector<2x8x1xf32> to vector<2x8x8xf32>
    %80 = arith.subf %76, %79 : vector<2x8x8xf32>
    %81 = math.exp %80 : vector<2x8x8xf32>
    %cst_31 = arith.constant dense<0.000000e+00> : vector<2x8xf32>
    %82 = vector.multi_reduction <add>, %81, %cst_31 [2] : vector<2x8x8xf32> to vector<2x8xf32>
    %83 = vector.shape_cast %82 : vector<2x8xf32> to vector<2x8x1xf32>
    %84 = vector.broadcast %83 : vector<2x8x1xf32> to vector<2x8x8xf32>
    %85 = arith.divf %81, %84 : vector<2x8x8xf32>
    %86 = arith.truncf %85 : vector<2x8x8xf32> to vector<2x8x8xbf16>
    "tpu.trace_start"() <{level = 10 : i32, message = "bqk,bkd->bqd"}> : () -> ()
    %cst_32 = arith.constant dense<0.000000e+00> : vector<2x8x8xf32>
    %87 = tpu.matmul %86, %73, %cst_32 {dimension_numbers = #tpu.dot_dimension_numbers<[2], [1], [1], [2], [0, 0, 0, 1, 1, 2], [0], [0]>} : vector<2x8x8xbf16>, vector<2x8x8xbf16>, vector<2x8x8xf32> -> vector<2x8x8xf32>
    "tpu.trace_stop"() : () -> ()
    %88 = vector.shape_cast %87 : vector<2x8x8xf32> to vector<16x8xf32>
    %89 = arith.truncf %88 : vector<16x8xf32> to vector<16x8xbf16>
    %90 = vector.extract_strided_slice %3 {offsets = [24, 0], sizes = [8, 32], strides = [1, 1]} : vector<32x32xbf16> to vector<8x32xbf16>
    %cst_33 = arith.constant dense<0.000000e+00> : vector<16x32xf32>
    %91 = tpu.matmul %89, %90, %cst_33 {dimension_numbers = #tpu.dot_dimension_numbers<[1], [0], [0], [1], [0, 0, 1, 1], [], []>} : vector<16x8xbf16>, vector<8x32xbf16>, vector<16x32xf32> -> vector<16x32xf32>
    %92 = arith.addf %70, %91 : vector<16x32xf32>
    %c0_34 = arith.constant 0 : index
    %c0_35 = arith.constant 0 : index
    %93 = vector.load %arg5[%c0_34, %c0_35] : memref<1x32xf32, #tpu.memory_space<vmem>>, vector<1x32xf32>
    %94 = vector.broadcast %93 : vector<1x32xf32> to vector<16x32xf32>
    %95 = arith.addf %92, %94 : vector<16x32xf32>
    %96 = vector.shape_cast %95 : vector<16x32xf32> to vector<2x8x32xf32>
    %c0_36 = arith.constant 0 : index
    %c0_37 = arith.constant 0 : index
    %c0_38 = arith.constant 0 : index
    %97 = vector.load %arg6[%c0_36, %c0_37, %c0_38] : memref<2x8x32xf32, #tpu.memory_space<vmem>>, vector<2x8x32xf32>
    tpu.vector_store %arg6[%c0_36, %c0_37, %c0_38], %96 {strides = array<i32>} : memref<2x8x32xf32, #tpu.memory_space<vmem>>, vector<2x8x32xf32>,
    return
  }
  func.func @transform_0(%arg0: i32) -> (i32, i32, i32) {
    %c0_i32 = arith.constant 0 : i32
    %c0_i32_0 = arith.constant 0 : i32
    %c0_i32_1 = arith.constant 0 : i32
    %c0_i32_2 = arith.constant 0 : i32
    return %c0_i32, %c0_i32_0, %c0_i32_1 : i32, i32, i32
  }
  func.func @transform_1(%arg0: i32) -> (i32, i32, i32) {
    %c0_i32 = arith.constant 0 : i32
    %c0_i32_0 = arith.constant 0 : i32
    %c0_i32_1 = arith.constant 0 : i32
    %c0_i32_2 = arith.constant 0 : i32
    return %c0_i32, %c0_i32_0, %c0_i32_1 : i32, i32, i32
  }
  func.func @transform_2(%arg0: i32) -> (i32, i32, i32) {
    %c0_i32 = arith.constant 0 : i32
    %c0_i32_0 = arith.constant 0 : i32
    %c0_i32_1 = arith.constant 0 : i32
    %c0_i32_2 = arith.constant 0 : i32
    return %c0_i32, %c0_i32_0, %c0_i32_1 : i32, i32, i32
  }
  func.func @transform_3(%arg0: i32) -> (i32, i32) {
    %c0_i32 = arith.constant 0 : i32
    %c0_i32_0 = arith.constant 0 : i32
    %c0_i32_1 = arith.constant 0 : i32
    return %c0_i32, %c0_i32_0 : i32, i32
  }
  func.func @transform_4(%arg0: i32) -> (i32, i32) {
    %c0_i32 = arith.constant 0 : i32
    %c0_i32_0 = arith.constant 0 : i32
    %c0_i32_1 = arith.constant 0 : i32
    return %c0_i32, %c0_i32_0 : i32, i32
  }
  func.func @transform_5(%arg0: i32) -> (i32, i32, i32) {
    %c0_i32 = arith.constant 0 : i32
    %c0_i32_0 = arith.constant 0 : i32
    %c0_i32_1 = arith.constant 0 : i32
    %c0_i32_2 = arith.constant 0 : i32
    return %c0_i32, %c0_i32_0, %c0_i32_1 : i32, i32, i32
  }
}

</mosaic_0001>

<llo_original>
// kernel: tpu_custom_call.1
$region0: #{tpu_custom_call.1}
  #allocation0 [shape = 'u32[]', space=smem, size = 0x4, offset = 0x4, fixed_abs, tag = 'smem constant byte address 0x4 - core index']
  #allocation1 [shape = 'u32[72,128]{1,0:T(1,128)}', space=vmem, size = 0x9000, scoped, tag = 'internal scratch']
  %s0 = inlined_call_operand.hbm [shape: bf16[2,8,32], index: 0, kind: input, shape index: {}]
  %s1 = inlined_call_operand.hbm [shape: bf16[2,8,32], index: 1, kind: input, shape index: {}]
  %s2 = inlined_call_operand.hbm [shape: bf16[2,8,32], index: 2, kind: input, shape index: {}]
  %s3 = inlined_call_operand.hbm [shape: bf16[32,32], index: 3, kind: input, shape index: {}]
  %s4 = inlined_call_operand.vmem [shape: f32[1,32], index: 4, kind: input, shape index: {}]
  %s5 = inlined_call_operand.hbm [shape: f32[2,8,32], index: 5, kind: output, shape index: {}]
  %s6 = sld [smem:[#allocation0]]
  $region46: #{tpu_custom_call.1} parent=0
    _
  %s8 = ssub.s32 1, %s6
  %s9 = scalar_select 0, %s8, %s6
  $region1: #{tpu_custom_call.1} parent=0
    #allocation2 [shape = 'u8[4096]{0}', space=vmem, size = 0x1000, scoped, tag = 'input window, operand 0, single buffered']
    #allocation3 [shape = 's32[1]{0}', space=sflag, size = 0x4, scoped, tag = 'scoped memory for tpu_custom_call.1']
    #allocation4 [shape = 's32[1]{0}', space=sflag, size = 0x4, scoped, tag = 'scoped memory for tpu_custom_call.1']
    #allocation5 [shape = 'u8[4096]{0}', space=vmem, size = 0x1000, scoped, tag = 'input window, operand 1, single buffered']
    #allocation6 [shape = 's32[1]{0}', space=sflag, size = 0x4, scoped, tag = 'scoped memory for tpu_custom_call.1']
    #allocation7 [shape = 'u8[4096]{0}', space=vmem, size = 0x1000, scoped, tag = 'input window, operand 2, single buffered']
    #allocation8 [shape = 'u8[8192]{0}', space=vmem, size = 0x2000, scoped, tag = 'input window, operand 3, single buffered']
    #allocation9 [shape = 's32[1]{0}', space=sflag, size = 0x4, scoped, tag = 'scoped memory for tpu_custom_call.1']
    #allocation10 [shape = 'u8[8192]{0}', space=vmem, size = 0x2000, scoped, tag = 'output window, operand 0, single buffered']
    %10 = vsyncpa [#allocation3], 0
    %11 = vsyncpa [#allocation6], 0
    %12 = vsyncpa [#allocation9], 0
    %13 = vsyncpa [#allocation4], 0
    // Predicated region
    $region2: #{tpu_custom_call.1} parent=1 // pred_check
      _
    $region3: #{tpu_custom_call.1} parent=1 // pred_check_branch
      %15 = sbr.rel (0) target = $region5
    $region4: #{tpu_custom_call.1} parent=1 // pred_region
      %17 = vsyncadd [#allocation3], 0
      %s18 = sshll.u32 %s0, 4
      %s19 = int_to_ptr.hbm [resolvable:$true] %s18
      %s20 = sshll.u32 [#allocation2], 4
      %s21 = int_to_ptr.vmem [resolvable:$true] %s20
      %26 = dma.hbm_to_vmem [thread:$0]  %s19, 128, %s21, [#allocation3], 64, 64, 4
    $region5: #{tpu_custom_call.1} parent=1 // pred_fallthru
      _
    // Predicated region
    $region6: #{tpu_custom_call.1} parent=1 // pred_check
      _
    $region7: #{tpu_custom_call.1} parent=1 // pred_check_branch
      %28 = sbr.rel (0) target = $region9
    $region8: #{tpu_custom_call.1} parent=1 // pred_region
      %30 = vsyncadd [#allocation6], 0
      %s31 = sshll.u32 %s1, 4
      %s32 = int_to_ptr.hbm [resolvable:$true] %s31
      %s33 = sshll.u32 [#allocation5], 4
      %s34 = int_to_ptr.vmem [resolvable:$true] %s33
      %39 = dma.hbm_to_vmem [thread:$0]  %s32, 128, %s34, [#allocation6], 64, 64, 4
    $region9: #{tpu_custom_call.1} parent=1 // pred_fallthru
      _
    // Predicated region
    $region10: #{tpu_custom_call.1} parent=1 // pred_check
      _
    $region11: #{tpu_custom_call.1} parent=1 // pred_check_branch
      %41 = sbr.rel (0) target = $region13
    $region12: #{tpu_custom_call.1} parent=1 // pred_region
      %43 = vsyncadd [#allocation6], 0
      %s44 = sshll.u32 %s2, 4
      %s45 = int_to_ptr.hbm [resolvable:$true] %s44
      %s46 = sshll.u32 [#allocation7], 4
      %s47 = int_to_ptr.vmem [resolvable:$true] %s46
      %52 = dma.hbm_to_vmem [thread:$0]  %s45, 128, %s47, [#allocation6], 64, 64, 4
    $region13: #{tpu_custom_call.1} parent=1 // pred_fallthru
      _
    // Predicated region
    $region14: #{tpu_custom_call.1} parent=1 // pred_check
      _
    $region15: #{tpu_custom_call.1} parent=1 // pred_check_branch
      %54 = sbr.rel (0) target = $region17
    $region16: #{tpu_custom_call.1} parent=1 // pred_region
      %56 = vsyncadd [#allocation9], 0
      %s57 = sshll.u32 %s3, 4
      %s58 = int_to_ptr.hbm [resolvable:$true] %s57
      %s59 = sshll.u32 [#allocation8], 4
      %s60 = int_to_ptr.vmem [resolvable:$true] %s59
      %65 = dma.hbm_to_vmem [thread:$0]  %s58, 256, %s60, [#allocation9], 64, 64, 4
    $region17: #{tpu_custom_call.1} parent=1 // pred_fallthru
      _
    // Predicated region
    $region18: #{tpu_custom_call.1} parent=1 // pred_check
      _
    $region19: #{tpu_custom_call.1} parent=1 // pred_check_branch
      %67 = sbr.rel (0) target = $region21
    $region20: #{tpu_custom_call.1} parent=1 // pred_region
      _
    $region21: #{tpu_custom_call.1} parent=1 // pred_fallthru
      _
    // Predicated region
    $region22: #{tpu_custom_call.1} parent=1 // pred_check
      _
    $region23: #{tpu_custom_call.1} parent=1 // pred_check_branch
      %69 = sbr.rel (0) target = $region25
    $region24: #{tpu_custom_call.1} parent=1 // pred_region
      %71 = dma.done [#allocation3], 128
    $region25: #{tpu_custom_call.1} parent=1 // pred_fallthru
      _
    // Predicated region
    $region26: #{tpu_custom_call.1} parent=1 // pred_check
      _
    $region27: #{tpu_custom_call.1} parent=1 // pred_check_branch
      %73 = sbr.rel (0) target = $region29
    $region28: #{tpu_custom_call.1} parent=1 // pred_region
      %75 = dma.done [#allocation6], 128
    $region29: #{tpu_custom_call.1} parent=1 // pred_fallthru
      _
    // Predicated region
    $region30: #{tpu_custom_call.1} parent=1 // pred_check
      _
    $region31: #{tpu_custom_call.1} parent=1 // pred_check_branch
      %77 = sbr.rel (0) target = $region33
    $region32: #{tpu_custom_call.1} parent=1 // pred_region
      %79 = dma.done [#allocation6], 128
    $region33: #{tpu_custom_call.1} parent=1 // pred_fallthru
      _
    // Predicated region
    $region34: #{tpu_custom_call.1} parent=1 // pred_check
      _
    $region35: #{tpu_custom_call.1} parent=1 // pred_check_branch
      %81 = sbr.rel (0) target = $region37
    $region36: #{tpu_custom_call.1} parent=1 // pred_region
      %83 = dma.done [#allocation9], 256
    $region37: #{tpu_custom_call.1} parent=1 // pred_fallthru
      _
    %v85 = vld [vmem:[#allocation2] sm:$0xf]
    %v86 = vld [vmem:[#allocation2 + $0x4] sm:$0xf]
    %v87 = vld [vmem:[#allocation5] sm:$0xf]
    %v88 = vld [vmem:[#allocation5 + $0x4] sm:$0xf]
    %v89 = vld [vmem:[#allocation7] sm:$0xf]
    %v90 = vld [vmem:[#allocation7 + $0x4] sm:$0xf]
    %v91 = vld [vmem:[#allocation8] sm:$0xf]
    %v92 = vld [vmem:[#allocation8 + $0x4] sm:$0xf]
    %v93 = vld [vmem:[#allocation8 + $0x8] sm:$0xf]
    %v94 = vld [vmem:[#allocation8 + $0xc] sm:$0xf]
    %vm95 = vcmask 64512
    %v97 = vsel %vm95, %v85, 0
    %v100 = vsel %vm95, %v87, 0
    %102 = vmatpush.bf16.xpose.msra.mxu0 0
    %103 = vmatpush.bf16.xpose.msra.mxu0 0
    %104 = vmatpush.bf16.xpose.msra.mxu0 0
    %105 = vmatpush.bf16.xpose.msra.mxu0 0
    %106 = vmatpush.bf16.xpose.msra.mxu0 0
    %107 = vmatpush.bf16.xpose.msra.mxu0 0
    %108 = vmatpush.bf16.xpose.msra.mxu0 0
    %109 = vmatpush.bf16.xpose.msra.mxu0 %v100
    %110 = vmatmul.bf16.gmra.mxu0 %v97
    %v111 = vpop.f32.mrf.mxu0
    %v112 = vadd.f32 0.0, %v111
    %v113 = vpop.f32.mrf.mxu0
    %114 = vdwg.mxu0
    %v116 = vsel %vm95, %v86, 0
    %v119 = vsel %vm95, %v88, 0
    %121 = vmatpush.bf16.xpose.msra.mxu0 0
    %122 = vmatpush.bf16.xpose.msra.mxu0 0
    %123 = vmatpush.bf16.xpose.msra.mxu0 0
    %124 = vmatpush.bf16.xpose.msra.mxu0 0
    %125 = vmatpush.bf16.xpose.msra.mxu0 0
    %126 = vmatpush.bf16.xpose.msra.mxu0 0
    %127 = vmatpush.bf16.xpose.msra.mxu0 0
    %128 = vmatpush.bf16.xpose.msra.mxu0 %v119
    %129 = vmatmul.bf16.gmra.mxu0 %v116
    %v130 = vpop.f32.mrf.mxu0
    %v131 = vadd.f32 0.0, %v130
    %v132 = vpop.f32.mrf.mxu0
    %133 = vdwg.mxu0
    %v134 = vmul.f32 %v112, 0.35355338
    %v135 = vmul.f32 %v131, 0.35355338
    %v136 = vsel %vm95, %v134, -inf
    %137 = vmax.xlane.f32.xlu0 %v136
    %v138 = vpop.xlane.xlu0 %137
    %v139 = vsel %vm95, %v135, -inf
    %140 = vmax.xlane.f32.xlu0 %v139
    %v141 = vpop.xlane.xlu0 %140
    %v142 = vsub.f32 %v134, %v138
    %v143 = vsub.f32 %v135, %v141
    %v144 = vmul.f32 %v142, 1.442695
    %v145 = vpow.pop %v144
    %v146 = vmul.f32 %v143, 1.442695
    %v147 = vpow.pop %v146
    %v148 = vsel %vm95, %v145, 0.0
    %149 = vadd.xlane.f32.xlu0 %v148
    %v150 = vpop.xlane.xlu0 %149
    %v151 = vsel %vm95, %v147, 0.0
    %152 = vadd.xlane.f32.xlu0 %v151
    %v153 = vpop.xlane.xlu0 %152
    %v154 = vrcp.pop %v150
    %v155 = vmul.f32 %v150, %v154
    %v156 = vsub.f32 1.0, %v155
    %v157 = vmul.f32 %v154, %v156
    %v158 = vadd.f32 %v154, %v157
    %vm159 = vweird.f32 %v150
    %vm160 = vweird.f32 %v154
    %vm161 = vmor %vm159, %vm160
    %v162 = vsel %vm161, %v154, %v158
    %v163 = vand.u32 2147483647, %v150
    %vm164 = vcmp.eq.f32.partialorder %v163, 8.507059e+37
    %v165 = vand.u32 %v150, 2147483648
    %v166 = vor.u32 1.1754944e-38, %v165
    %v167 = vsel %vm164, %v166, %v162
    %v168 = vmul.f32 %v145, %v167
    %v169 = vrcp.pop %v153
    %v170 = vmul.f32 %v153, %v169
    %v171 = vsub.f32 1.0, %v170
    %v172 = vmul.f32 %v169, %v171
    %v173 = vadd.f32 %v169, %v172
    %vm174 = vweird.f32 %v153
    %vm175 = vweird.f32 %v169
    %vm176 = vmor %vm174, %vm175
    %v177 = vsel %vm176, %v169, %v173
    %v178 = vand.u32 2147483647, %v153
    %vm179 = vcmp.eq.f32.partialorder %v178, 8.507059e+37
    %v180 = vand.u32 %v153, 2147483648
    %v181 = vor.u32 1.1754944e-38, %v180
    %v182 = vsel %vm179, %v181, %v177
    %v183 = vmul.f32 %v147, %v182
    %v184 = vpack.c.bf16 %v168, %v168
    %v185 = vpack.c.bf16 %v183, %v183
    %v187 = vsel %vm95, %v184, 0
    %vm189 = vcmask 1043456
    %v191 = vsel %vm189, %v89, 0
    %193 = vmatpush.bf16.msra.mxu0 0
    %194 = vmatpush.bf16.msra.mxu0 0
    %195 = vmatpush.bf16.msra.mxu0 0
    %196 = vmatpush.bf16.msra.mxu0 0
    %197 = vmatpush.bf16.msra.mxu0 0
    %198 = vmatpush.bf16.msra.mxu0 0
    %199 = vmatpush.bf16.msra.mxu0 0
    %200 = vmatpush.bf16.msra.mxu0 %v191
    %201 = vmatmul.bf16.gmra.mxu0 %v187
    %v202 = vpop.f32.mrf.mxu0
    %v203 = vadd.f32 0.0, %v202
    %v204 = vpop.f32.mrf.mxu0
    %205 = vdwg.mxu0
    %v207 = vsel %vm95, %v185, 0
    %v210 = vsel %vm189, %v90, 0
    %212 = vmatpush.bf16.msra.mxu0 0
    %213 = vmatpush.bf16.msra.mxu0 0
    %214 = vmatpush.bf16.msra.mxu0 0
    %215 = vmatpush.bf16.msra.mxu0 0
    %216 = vmatpush.bf16.msra.mxu0 0
    %217 = vmatpush.bf16.msra.mxu0 0
    %218 = vmatpush.bf16.msra.mxu0 0
    %219 = vmatpush.bf16.msra.mxu0 %v210
    %220 = vmatmul.bf16.gmra.mxu0 %v207
    %v221 = vpop.f32.mrf.mxu0
    %v222 = vadd.f32 0.0, %v221
    %v223 = vpop.f32.mrf.mxu0
    %224 = vdwg.mxu0
    %v225 = vpack.c.bf16 %v222, %v203
    %v227 = vunpack.c.l.b16 %v85
    %v228 = vpack.c.b16 %v227, %v227
    %229 = vrot.lane.b32.xlu0 %v228, 120
    %v230 = vpop.permute.xlu0 %229
    %v232 = vunpack.c.l.b16 %v87
    %v233 = vpack.c.b16 %v232, %v232
    %234 = vrot.lane.b32.xlu0 %v233, 120
    %v235 = vpop.permute.xlu0 %234
    %v237 = vsel %vm95, %v230, 0
    %v240 = vsel %vm95, %v235, 0
    %242 = vmatpush.bf16.xpose.msra.mxu0 0
    %243 = vmatpush.bf16.xpose.msra.mxu0 0
    %244 = vmatpush.bf16.xpose.msra.mxu0 0
    %245 = vmatpush.bf16.xpose.msra.mxu0 0
    %246 = vmatpush.bf16.xpose.msra.mxu0 0
    %247 = vmatpush.bf16.xpose.msra.mxu0 0
    %248 = vmatpush.bf16.xpose.msra.mxu0 0
    %249 = vmatpush.bf16.xpose.msra.mxu0 %v240
    %250 = vmatmul.bf16.gmra.mxu0 %v237
    %v251 = vpop.f32.mrf.mxu0
    %v252 = vadd.f32 0.0, %v251
    %v253 = vpop.f32.mrf.mxu0
    %254 = vdwg.mxu0
    %v256 = vunpack.c.l.b16 %v86
    %v257 = vpack.c.b16 %v256, %v256
    %258 = vrot.lane.b32.xlu0 %v257, 120
    %v259 = vpop.permute.xlu0 %258
    %v261 = vunpack.c.l.b16 %v88
    %v262 = vpack.c.b16 %v261, %v261
    %263 = vrot.lane.b32.xlu0 %v262, 120
    %v264 = vpop.permute.xlu0 %263
    %v266 = vsel %vm95, %v259, 0
    %v269 = vsel %vm95, %v264, 0
    %271 = vmatpush.bf16.xpose.msra.mxu0 0
    %272 = vmatpush.bf16.xpose.msra.mxu0 0
    %273 = vmatpush.bf16.xpose.msra.mxu0 0
    %274 = vmatpush.bf16.xpose.msra.mxu0 0
    %275 = vmatpush.bf16.xpose.msra.mxu0 0
    %276 = vmatpush.bf16.xpose.msra.mxu0 0
    %277 = vmatpush.bf16.xpose.msra.mxu0 0
    %278 = vmatpush.bf16.xpose.msra.mxu0 %v269
    %279 = vmatmul.bf16.gmra.mxu0 %v266
    %v280 = vpop.f32.mrf.mxu0
    %v281 = vadd.f32 0.0, %v280
    %v282 = vpop.f32.mrf.mxu0
    %283 = vdwg.mxu0
    %v284 = vmul.f32 %v252, 0.35355338
    %v285 = vmul.f32 %v281, 0.35355338
    %v286 = vsel %vm95, %v284, -inf
    %287 = vmax.xlane.f32.xlu0 %v286
    %v288 = vpop.xlane.xlu0 %287
    %v289 = vsel %vm95, %v285, -inf
    %290 = vmax.xlane.f32.xlu0 %v289
    %v291 = vpop.xlane.xlu0 %290
    %v292 = vsub.f32 %v284, %v288
    %v293 = vsub.f32 %v285, %v291
    %v294 = vmul.f32 %v292, 1.442695
    %v295 = vpow.pop %v294
    %v296 = vmul.f32 %v293, 1.442695
    %v297 = vpow.pop %v296
    %v298 = vsel %vm95, %v295, 0.0
    %299 = vadd.xlane.f32.xlu0 %v298
    %v300 = vpop.xlane.xlu0 %299
    %v301 = vsel %vm95, %v297, 0.0
    %302 = vadd.xlane.f32.xlu0 %v301
    %v303 = vpop.xlane.xlu0 %302
    %v304 = vrcp.pop %v300
    %v305 = vmul.f32 %v300, %v304
    %v306 = vsub.f32 1.0, %v305
    %v307 = vmul.f32 %v304, %v306
    %v308 = vadd.f32 %v304, %v307
    %vm309 = vweird.f32 %v300
    %vm310 = vweird.f32 %v304
    %vm311 = vmor %vm309, %vm310
    %v312 = vsel %vm311, %v304, %v308
    %v313 = vand.u32 2147483647, %v300
    %vm314 = vcmp.eq.f32.partialorder %v313, 8.507059e+37
    %v315 = vand.u32 %v300, 2147483648
    %v316 = vor.u32 1.1754944e-38, %v315
    %v317 = vsel %vm314, %v316, %v312
    %v318 = vmul.f32 %v295, %v317
    %v319 = vrcp.pop %v303
    %v320 = vmul.f32 %v303, %v319
    %v321 = vsub.f32 1.0, %v320
    %v322 = vmul.f32 %v319, %v321
    %v323 = vadd.f32 %v319, %v322
    %vm324 = vweird.f32 %v303
    %vm325 = vweird.f32 %v319
    %vm326 = vmor %vm324, %vm325
    %v327 = vsel %vm326, %v319, %v323
    %v328 = vand.u32 2147483647, %v303
    %vm329 = vcmp.eq.f32.partialorder %v328, 8.507059e+37
    %v330 = vand.u32 %v303, 2147483648
    %v331 = vor.u32 1.1754944e-38, %v330
    %v332 = vsel %vm329, %v331, %v327
    %v333 = vmul.f32 %v297, %v332
    %v334 = vpack.c.bf16 %v318, %v318
    %v335 = vpack.c.bf16 %v333, %v333
    %v337 = vunpack.c.l.b16 %v89
    %v338 = vpack.c.b16 %v337, %v337
    %339 = vrot.lane.b32.xlu0 %v338, 120
    %v340 = vpop.permute.xlu0 %339
    %v342 = vsel %vm95, %v334, 0
    %v345 = vsel %vm189, %v340, 0
    %347 = vmatpush.bf16.msra.mxu0 0
    %348 = vmatpush.bf16.msra.mxu0 0
    %349 = vmatpush.bf16.msra.mxu0 0
    %350 = vmatpush.bf16.msra.mxu0 0
    %351 = vmatpush.bf16.msra.mxu0 0
    %352 = vmatpush.bf16.msra.mxu0 0
    %353 = vmatpush.bf16.msra.mxu0 0
    %354 = vmatpush.bf16.msra.mxu0 %v345
    %355 = vmatmul.bf16.gmra.mxu0 %v342
    %v356 = vpop.f32.mrf.mxu0
    %v357 = vadd.f32 0.0, %v356
    %v358 = vpop.f32.mrf.mxu0
    %359 = vdwg.mxu0
    %v361 = vunpack.c.l.b16 %v90
    %v362 = vpack.c.b16 %v361, %v361
    %363 = vrot.lane.b32.xlu0 %v362, 120
    %v364 = vpop.permute.xlu0 %363
    %v366 = vsel %vm95, %v335, 0
    %v369 = vsel %vm189, %v364, 0
    %371 = vmatpush.bf16.msra.mxu0 0
    %372 = vmatpush.bf16.msra.mxu0 0
    %373 = vmatpush.bf16.msra.mxu0 0
    %374 = vmatpush.bf16.msra.mxu0 0
    %375 = vmatpush.bf16.msra.mxu0 0
    %376 = vmatpush.bf16.msra.mxu0 0
    %377 = vmatpush.bf16.msra.mxu0 0
    %378 = vmatpush.bf16.msra.mxu0 %v369
    %379 = vmatmul.bf16.gmra.mxu0 %v366
    %v380 = vpop.f32.mrf.mxu0
    %v381 = vadd.f32 0.0, %v380
    %v382 = vpop.f32.mrf.mxu0
    %383 = vdwg.mxu0
    %v384 = vpack.c.bf16 %v381, %v357
    %v386 = vsel %vm95, %v384, 0
    %v389 = vsel %vm189, %v92, 0
    %391 = vmatpush.bf16.msra.mxu0 0
    %392 = vmatpush.bf16.msra.mxu0 0
    %393 = vmatpush.bf16.msra.mxu0 0
    %394 = vmatpush.bf16.msra.mxu0 0
    %395 = vmatpush.bf16.msra.mxu0 0
    %396 = vmatpush.bf16.msra.mxu0 0
    %397 = vmatpush.bf16.msra.mxu0 0
    %398 = vmatpush.bf16.msra.mxu0 %v389
    %399 = vmatmul.bf16.gmra.mxu0 %v386
    %v400 = vpop.f32.mrf.mxu0
    %v401 = vadd.f32 0.0, %v400
    %v402 = vpop.f32.mrf.mxu0
    %v403 = vadd.f32 0.0, %v402
    %404 = vdwg.mxu0
    %v406 = vsel %vm95, %v225, 0
    %v409 = vsel %vm189, %v91, 0
    %411 = vmatpush.bf16.msra.mxu0 0
    %412 = vmatpush.bf16.msra.mxu0 0
    %413 = vmatpush.bf16.msra.mxu0 0
    %414 = vmatpush.bf16.msra.mxu0 0
    %415 = vmatpush.bf16.msra.mxu0 0
    %416 = vmatpush.bf16.msra.mxu0 0
    %417 = vmatpush.bf16.msra.mxu0 0
    %418 = vmatpush.bf16.msra.mxu0 %v409
    %419 = vmatmul.bf16.gmra.mxu0 %v406
    %v420 = vpop.f32.mrf.mxu0
    %v421 = vadd.f32 %v401, %v420
    %v422 = vpop.f32.mrf.mxu0
    %v423 = vadd.f32 %v403, %v422
    %424 = vdwg.mxu0
    %425 = vrot.lane.b32.xlu0 %v228, 112
    %v426 = vpop.permute.xlu0 %425
    %427 = vrot.lane.b32.xlu0 %v233, 112
    %v428 = vpop.permute.xlu0 %427
    %v430 = vsel %vm95, %v426, 0
    %v433 = vsel %vm95, %v428, 0
    %435 = vmatpush.bf16.xpose.msra.mxu0 0
    %436 = vmatpush.bf16.xpose.msra.mxu0 0
    %437 = vmatpush.bf16.xpose.msra.mxu0 0
    %438 = vmatpush.bf16.xpose.msra.mxu0 0
    %439 = vmatpush.bf16.xpose.msra.mxu0 0
    %440 = vmatpush.bf16.xpose.msra.mxu0 0
    %441 = vmatpush.bf16.xpose.msra.mxu0 0
    %442 = vmatpush.bf16.xpose.msra.mxu0 %v433
    %443 = vmatmul.bf16.gmra.mxu0 %v430
    %v444 = vpop.f32.mrf.mxu0
    %v445 = vadd.f32 0.0, %v444
    %v446 = vpop.f32.mrf.mxu0
    %447 = vdwg.mxu0
    %448 = vrot.lane.b32.xlu0 %v257, 112
    %v449 = vpop.permute.xlu0 %448
    %450 = vrot.lane.b32.xlu0 %v262, 112
    %v451 = vpop.permute.xlu0 %450
    %v453 = vsel %vm95, %v449, 0
    %v456 = vsel %vm95, %v451, 0
    %458 = vmatpush.bf16.xpose.msra.mxu0 0
    %459 = vmatpush.bf16.xpose.msra.mxu0 0
    %460 = vmatpush.bf16.xpose.msra.mxu0 0
    %461 = vmatpush.bf16.xpose.msra.mxu0 0
    %462 = vmatpush.bf16.xpose.msra.mxu0 0
    %463 = vmatpush.bf16.xpose.msra.mxu0 0
    %464 = vmatpush.bf16.xpose.msra.mxu0 0
    %465 = vmatpush.bf16.xpose.msra.mxu0 %v456
    %466 = vmatmul.bf16.gmra.mxu0 %v453
    %v467 = vpop.f32.mrf.mxu0
    %v468 = vadd.f32 0.0, %v467
    %v469 = vpop.f32.mrf.mxu0
    %470 = vdwg.mxu0
    %v471 = vmul.f32 %v445, 0.35355338
    %v472 = vmul.f32 %v468, 0.35355338
    %v473 = vsel %vm95, %v471, -inf
    %474 = vmax.xlane.f32.xlu0 %v473
    %v475 = vpop.xlane.xlu0 %474
    %v476 = vsel %vm95, %v472, -inf
    %477 = vmax.xlane.f32.xlu0 %v476
    %v478 = vpop.xlane.xlu0 %477
    %v479 = vsub.f32 %v471, %v475
    %v480 = vsub.f32 %v472, %v478
    %v481 = vmul.f32 %v479, 1.442695
    %v482 = vpow.pop %v481
    %v483 = vmul.f32 %v480, 1.442695
    %v484 = vpow.pop %v483
    %v485 = vsel %vm95, %v482, 0.0
    %486 = vadd.xlane.f32.xlu0 %v485
    %v487 = vpop.xlane.xlu0 %486
    %v488 = vsel %vm95, %v484, 0.0
    %489 = vadd.xlane.f32.xlu0 %v488
    %v490 = vpop.xlane.xlu0 %489
    %v491 = vrcp.pop %v487
    %v492 = vmul.f32 %v487, %v491
    %v493 = vsub.f32 1.0, %v492
    %v494 = vmul.f32 %v491, %v493
    %v495 = vadd.f32 %v491, %v494
    %vm496 = vweird.f32 %v487
    %vm497 = vweird.f32 %v491
    %vm498 = vmor %vm496, %vm497
    %v499 = vsel %vm498, %v491, %v495
    %v500 = vand.u32 2147483647, %v487
    %vm501 = vcmp.eq.f32.partialorder %v500, 8.507059e+37
    %v502 = vand.u32 %v487, 2147483648
    %v503 = vor.u32 1.1754944e-38, %v502
    %v504 = vsel %vm501, %v503, %v499
    %v505 = vmul.f32 %v482, %v504
    %v506 = vrcp.pop %v490
    %v507 = vmul.f32 %v490, %v506
    %v508 = vsub.f32 1.0, %v507
    %v509 = vmul.f32 %v506, %v508
    %v510 = vadd.f32 %v506, %v509
    %vm511 = vweird.f32 %v490
    %vm512 = vweird.f32 %v506
    %vm513 = vmor %vm511, %vm512
    %v514 = vsel %vm513, %v506, %v510
    %v515 = vand.u32 2147483647, %v490
    %vm516 = vcmp.eq.f32.partialorder %v515, 8.507059e+37
    %v517 = vand.u32 %v490, 2147483648
    %v518 = vor.u32 1.1754944e-38, %v517
    %v519 = vsel %vm516, %v518, %v514
    %v520 = vmul.f32 %v484, %v519
    %v521 = vpack.c.bf16 %v505, %v505
    %v522 = vpack.c.bf16 %v520, %v520
    %523 = vrot.lane.b32.xlu0 %v338, 112
    %v524 = vpop.permute.xlu0 %523
    %v526 = vsel %vm95, %v521, 0
    %v529 = vsel %vm189, %v524, 0
    %531 = vmatpush.bf16.msra.mxu0 0
    %532 = vmatpush.bf16.msra.mxu0 0
    %533 = vmatpush.bf16.msra.mxu0 0
    %534 = vmatpush.bf16.msra.mxu0 0
    %535 = vmatpush.bf16.msra.mxu0 0
    %536 = vmatpush.bf16.msra.mxu0 0
    %537 = vmatpush.bf16.msra.mxu0 0
    %538 = vmatpush.bf16.msra.mxu0 %v529
    %539 = vmatmul.bf16.gmra.mxu0 %v526
    %v540 = vpop.f32.mrf.mxu0
    %v541 = vadd.f32 0.0, %v540
    %v542 = vpop.f32.mrf.mxu0
    %543 = vdwg.mxu0
    %544 = vrot.lane.b32.xlu0 %v362, 112
    %v545 = vpop.permute.xlu0 %544
    %v547 = vsel %vm95, %v522, 0
    %v550 = vsel %vm189, %v545, 0
    %552 = vmatpush.bf16.msra.mxu0 0
    %553 = vmatpush.bf16.msra.mxu0 0
    %554 = vmatpush.bf16.msra.mxu0 0
    %555 = vmatpush.bf16.msra.mxu0 0
    %556 = vmatpush.bf16.msra.mxu0 0
    %557 = vmatpush.bf16.msra.mxu0 0
    %558 = vmatpush.bf16.msra.mxu0 0
    %559 = vmatpush.bf16.msra.mxu0 %v550
    %560 = vmatmul.bf16.gmra.mxu0 %v547
    %v561 = vpop.f32.mrf.mxu0
    %v562 = vadd.f32 0.0, %v561
    %v563 = vpop.f32.mrf.mxu0
    %564 = vdwg.mxu0
    %v565 = vpack.c.bf16 %v562, %v541
    %v567 = vsel %vm95, %v565, 0
    %v570 = vsel %vm189, %v93, 0
    %572 = vmatpush.bf16.msra.mxu0 0
    %573 = vmatpush.bf16.msra.mxu0 0
    %574 = vmatpush.bf16.msra.mxu0 0
    %575 = vmatpush.bf16.msra.mxu0 0
    %576 = vmatpush.bf16.msra.mxu0 0
    %577 = vmatpush.bf16.msra.mxu0 0
    %578 = vmatpush.bf16.msra.mxu0 0
    %579 = vmatpush.bf16.msra.mxu0 %v570
    %580 = vmatmul.bf16.gmra.mxu0 %v567
    %v581 = vpop.f32.mrf.mxu0
    %v582 = vadd.f32 0.0, %v581
    %v583 = vpop.f32.mrf.mxu0
    %v584 = vadd.f32 0.0, %v583
    %585 = vdwg.mxu0
    %v586 = vadd.f32 %v421, %v582
    %v587 = vadd.f32 %v423, %v584
    %588 = vrot.lane.b32.xlu0 %v228, 104
    %v589 = vpop.permute.xlu0 %588
    %590 = vrot.lane.b32.xlu0 %v233, 104
    %v591 = vpop.permute.xlu0 %590
    %v593 = vsel %vm95, %v589, 0
    %v596 = vsel %vm95, %v591, 0
    %598 = vmatpush.bf16.xpose.msra.mxu0 0
    %599 = vmatpush.bf16.xpose.msra.mxu0 0
    %600 = vmatpush.bf16.xpose.msra.mxu0 0
    %601 = vmatpush.bf16.xpose.msra.mxu0 0
    %602 = vmatpush.bf16.xpose.msra.mxu0 0
    %603 = vmatpush.bf16.xpose.msra.mxu0 0
    %604 = vmatpush.bf16.xpose.msra.mxu0 0
    %605 = vmatpush.bf16.xpose.msra.mxu0 %v596
    %606 = vmatmul.bf16.gmra.mxu0 %v593
    %v607 = vpop.f32.mrf.mxu0
    %v608 = vadd.f32 0.0, %v607
    %v609 = vpop.f32.mrf.mxu0
    %610 = vdwg.mxu0
    %611 = vrot.lane.b32.xlu0 %v257, 104
    %v612 = vpop.permute.xlu0 %611
    %613 = vrot.lane.b32.xlu0 %v262, 104
    %v614 = vpop.permute.xlu0 %613
    %v616 = vsel %vm95, %v612, 0
    %v619 = vsel %vm95, %v614, 0
    %621 = vmatpush.bf16.xpose.msra.mxu0 0
    %622 = vmatpush.bf16.xpose.msra.mxu0 0
    %623 = vmatpush.bf16.xpose.msra.mxu0 0
    %624 = vmatpush.bf16.xpose.msra.mxu0 0
    %625 = vmatpush.bf16.xpose.msra.mxu0 0
    %626 = vmatpush.bf16.xpose.msra.mxu0 0
    %627 = vmatpush.bf16.xpose.msra.mxu0 0
    %628 = vmatpush.bf16.xpose.msra.mxu0 %v619
    %629 = vmatmul.bf16.gmra.mxu0 %v616
    %v630 = vpop.f32.mrf.mxu0
    %v631 = vadd.f32 0.0, %v630
    %v632 = vpop.f32.mrf.mxu0
    %633 = vdwg.mxu0
    %v634 = vmul.f32 %v608, 0.35355338
    %v635 = vmul.f32 %v631, 0.35355338
    %v636 = vsel %vm95, %v634, -inf
    %637 = vmax.xlane.f32.xlu0 %v636
    %v638 = vpop.xlane.xlu0 %637
    %v639 = vsel %vm95, %v635, -inf
    %640 = vmax.xlane.f32.xlu0 %v639
    %v641 = vpop.xlane.xlu0 %640
    %v642 = vsub.f32 %v634, %v638
    %v643 = vsub.f32 %v635, %v641
    %v644 = vmul.f32 %v642, 1.442695
    %v645 = vpow.pop %v644
    %v646 = vmul.f32 %v643, 1.442695
    %v647 = vpow.pop %v646
    %v648 = vsel %vm95, %v645, 0.0
    %649 = vadd.xlane.f32.xlu0 %v648
    %v650 = vpop.xlane.xlu0 %649
    %v651 = vsel %vm95, %v647, 0.0
    %652 = vadd.xlane.f32.xlu0 %v651
    %v653 = vpop.xlane.xlu0 %652
    %v654 = vrcp.pop %v650
    %v655 = vmul.f32 %v650, %v654
    %v656 = vsub.f32 1.0, %v655
    %v657 = vmul.f32 %v654, %v656
    %v658 = vadd.f32 %v654, %v657
    %vm659 = vweird.f32 %v650
    %vm660 = vweird.f32 %v654
    %vm661 = vmor %vm659, %vm660
    %v662 = vsel %vm661, %v654, %v658
    %v663 = vand.u32 2147483647, %v650
    %vm664 = vcmp.eq.f32.partialorder %v663, 8.507059e+37
    %v665 = vand.u32 %v650, 2147483648
    %v666 = vor.u32 1.1754944e-38, %v665
    %v667 = vsel %vm664, %v666, %v662
    %v668 = vmul.f32 %v645, %v667
    %v669 = vrcp.pop %v653
    %v670 = vmul.f32 %v653, %v669
    %v671 = vsub.f32 1.0, %v670
    %v672 = vmul.f32 %v669, %v671
    %v673 = vadd.f32 %v669, %v672
    %vm674 = vweird.f32 %v653
    %vm675 = vweird.f32 %v669
    %vm676 = vmor %vm674, %vm675
    %v677 = vsel %vm676, %v669, %v673
    %v678 = vand.u32 2147483647, %v653
    %vm679 = vcmp.eq.f32.partialorder %v678, 8.507059e+37
    %v680 = vand.u32 %v653, 2147483648
    %v681 = vor.u32 1.1754944e-38, %v680
    %v682 = vsel %vm679, %v681, %v677
    %v683 = vmul.f32 %v647, %v682
    %v684 = vpack.c.bf16 %v668, %v668
    %v685 = vpack.c.bf16 %v683, %v683
    %686 = vrot.lane.b32.xlu0 %v338, 104
    %v687 = vpop.permute.xlu0 %686
    %v689 = vsel %vm95, %v684, 0
    %v692 = vsel %vm189, %v687, 0
    %694 = vmatpush.bf16.msra.mxu0 0
    %695 = vmatpush.bf16.msra.mxu0 0
    %696 = vmatpush.bf16.msra.mxu0 0
    %697 = vmatpush.bf16.msra.mxu0 0
    %698 = vmatpush.bf16.msra.mxu0 0
    %699 = vmatpush.bf16.msra.mxu0 0
    %700 = vmatpush.bf16.msra.mxu0 0
    %701 = vmatpush.bf16.msra.mxu0 %v692
    %702 = vmatmul.bf16.gmra.mxu0 %v689
    %v703 = vpop.f32.mrf.mxu0
    %v704 = vadd.f32 0.0, %v703
    %v705 = vpop.f32.mrf.mxu0
    %706 = vdwg.mxu0
    %707 = vrot.lane.b32.xlu0 %v362, 104
    %v708 = vpop.permute.xlu0 %707
    %v710 = vsel %vm95, %v685, 0
    %v713 = vsel %vm189, %v708, 0
    %715 = vmatpush.bf16.msra.mxu0 0
    %716 = vmatpush.bf16.msra.mxu0 0
    %717 = vmatpush.bf16.msra.mxu0 0
    %718 = vmatpush.bf16.msra.mxu0 0
    %719 = vmatpush.bf16.msra.mxu0 0
    %720 = vmatpush.bf16.msra.mxu0 0
    %721 = vmatpush.bf16.msra.mxu0 0
    %722 = vmatpush.bf16.msra.mxu0 %v713
    %723 = vmatmul.bf16.gmra.mxu0 %v710
    %v724 = vpop.f32.mrf.mxu0
    %v725 = vadd.f32 0.0, %v724
    %v726 = vpop.f32.mrf.mxu0
    %727 = vdwg.mxu0
    %v728 = vpack.c.bf16 %v725, %v704
    %v730 = vsel %vm95, %v728, 0
    %v733 = vsel %vm189, %v94, 0
    %735 = vmatpush.bf16.msra.mxu0 0
    %736 = vmatpush.bf16.msra.mxu0 0
    %737 = vmatpush.bf16.msra.mxu0 0
    %738 = vmatpush.bf16.msra.mxu0 0
    %739 = vmatpush.bf16.msra.mxu0 0
    %740 = vmatpush.bf16.msra.mxu0 0
    %741 = vmatpush.bf16.msra.mxu0 0
    %742 = vmatpush.bf16.msra.mxu0 %v733
    %743 = vmatmul.bf16.gmra.mxu0 %v730
    %v744 = vpop.f32.mrf.mxu0
    %v745 = vadd.f32 0.0, %v744
    %v746 = vpop.f32.mrf.mxu0
    %v747 = vadd.f32 0.0, %v746
    %748 = vdwg.mxu0
    %v749 = vadd.f32 %v586, %v745
    %v750 = vadd.f32 %v587, %v747
    %v751 = vld [vmem:[%s4] sm:$0x1]
    %v753 = vperm.slane %v751, 0
    %v755 = vadd.f32 %v749, %v753
    %v756 = vadd.f32 %v750, %v753
    %vm757 = vcmask 261120
    %758 = vst.msk [vmem:[#allocation10] sm:$0xff] %vm757, %v755
    %759 = vst.msk [vmem:[#allocation10 + $0x8] sm:$0xff] %vm757, %v756
    // Predicated region
    $region38: #{tpu_custom_call.1} parent=1 // pred_check
      _
    $region39: #{tpu_custom_call.1} parent=1 // pred_check_branch
      %761 = sbr.rel (0) target = $region41
    $region40: #{tpu_custom_call.1} parent=1 // pred_region
      %763 = vsyncadd [#allocation4], 0
      %s764 = sshll.u32 [#allocation10], 4
      %s765 = int_to_ptr.vmem [resolvable:$true] %s764
      %s766 = sshll.u32 %s5, 4
      %s767 = int_to_ptr.hbm [resolvable:$true] %s766
      %772 = dma.vmem_to_hbm [thread:$0]  %s765, 256, %s767, [#allocation4], 128, 128, 8
    $region41: #{tpu_custom_call.1} parent=1 // pred_fallthru
      _
    // Predicated region
    $region42: #{tpu_custom_call.1} parent=1 // pred_check
      _
    $region43: #{tpu_custom_call.1} parent=1 // pred_check_branch
      %774 = sbr.rel (0) target = $region45
    $region44: #{tpu_custom_call.1} parent=1 // pred_region
      %776 = dma.done [#allocation4], 256
    $region45: #{tpu_custom_call.1} parent=1 // pred_fallthru
      _
    %777 = vsyncpa [#allocation3], 1
    %778 = vsyncpa [#allocation6], 1
    %779 = vsyncpa [#allocation9], 1
    %780 = vsyncpa [#allocation4], 1

</llo_original>
